<compile_context>
chip_gen: v6e
topology: v6e:2x2x1
jax: 0.10.0
libtpu: 0.0.40
codegen_flags: <defaults>
</compile_context>

<pallas_src>
import math

import jax
import jax.numpy as jnp
import numpy as np
from jax.experimental import pallas as pl
from jax.experimental.pallas import tpu as pltpu


def pe_tile_kernel(row_a_ref, row_b_ref, o_ref):
    """Write one [R_TILE, W] tile: o[r, l] = sin(r_global * row_a[l] + row_b[l]).

    row_a / row_b are precomputed per-lane rows (shape (1, W)) so the only
    per-element work is one multiply, one add and one EUP sin.
    """
    rt = o_ref.shape[0]
    base = pl.program_id(0) * rt                                   # global row offset of this tile
    r_col = (base + jax.lax.broadcasted_iota(jnp.int32, (rt, 1), 0)).astype(jnp.float32)
    o_ref[...] = jnp.sin(r_col * row_a_ref[...] + row_b_ref[...])


def positional_embedding(x, d_model, max_len=5000, tile_rows=None):
    """Pallas equivalent of PositionalEmbedding.forward: pe[:, :x.shape[1], :]."""
    L = int(x.shape[1])
    if L > max_len:
        raise ValueError(f"sequence length {L} exceeds max_len={max_len}")
    D = int(d_model)

    # Host-side static per-feature frequency / phase (matches the PyTorch buffer:
    # even j -> sin(pos * exp(-j*ln(1e4)/D)), odd j -> cos(...) = sin(... + pi/2)).
    j = np.arange(D)
    freq = np.exp(-(j - (j % 2)).astype(np.float64) * (math.log(10000.0) / D))
    phase = (j % 2).astype(np.float64) * (math.pi / 2.0)

    # Lane-dense flattening when D < 128: pack P = 128/D positions per 128-lane
    # row.  flat index f = pos*D + j, row r = f // 128, lane l = f % 128, with
    # pos = r*P + l//D and j = l % D.  Fold everything lane-dependent into rows:
    #   angle = pos*freq[j] + phase[j] = r * (P*freq[l%D]) + ((l//D)*freq[l%D] + phase[l%D])
    use_flat = (D < 128) and (128 % D == 0) and ((L * D) % 128 == 0)

    if use_flat:
        P = 128 // D
        n_rows = (L * D) // 128
        lane_freq = np.tile(freq, P)
        lane_phase = np.tile(phase, P)
        lane_posoff = np.repeat(np.arange(P), D).astype(np.float64)
        row_a = (P * lane_freq).astype(np.float32)
        row_b = (lane_posoff * lane_freq + lane_phase).astype(np.float32)
        W = 128
        out_struct = jax.ShapeDtypeStruct((n_rows, W), jnp.float32)
    else:
        row_a = freq.astype(np.float32)
        row_b = phase.astype(np.float32)
        W = D
        n_rows = L
        out_struct = jax.ShapeDtypeStruct((1, L, D), jnp.float32)

    # Row tile: ~2 MiB per output buffer (double-buffered writeback stays tiny on
    # every generation).  Full-extent block when small; multiple of 8 when tiled.
    if tile_rows is None:
        target = max(8, (2 * 1024 * 1024) // (W * 4))
    else:
        target = max(8, int(tile_rows))
    r_tile = n_rows if n_rows <= target else (target // 8) * 8
    grid = (pl.cdiv(n_rows, r_tile),)

    row_a = jnp.asarray(row_a).reshape(1, W)
    row_b = jnp.asarray(row_b).reshape(1, W)

    in_specs = [pl.BlockSpec((1, W), lambda i: (0, 0)),
                pl.BlockSpec((1, W), lambda i: (0, 0))]
    if use_flat:
        out_specs = pl.BlockSpec((r_tile, W), lambda i: (i, 0))
    else:
        # Leading batch-of-1 dim squeezed out of the kernel view.
        out_specs = pl.BlockSpec((None, r_tile, W), lambda i: (0, i, 0))

    out = pl.pallas_call(
        pe_tile_kernel,
        out_shape=out_struct,
        grid=grid,
        in_specs=in_specs,
        out_specs=out_specs,
        compiler_params=pltpu.CompilerParams(
            dimension_semantics=("parallel",)),
        cost_estimate=pl.CostEstimate(
            flops=3 * L * D,                 # iota add + mul + add per element
            transcendentals=L * D,           # exactly one sin per element
            bytes_accessed=L * D * 4 + 2 * W * 4),
    )(row_a, row_b)

    if use_flat:
        out = out.reshape(1, L, D)           # contiguous reshape: free in XLA
    return out


def reference_pe(L, d_model, max_len=5000):
    """Numpy float32 reference mirroring the PyTorch buffer construction."""
    pe = np.zeros((max_len, d_model), dtype=np.float32)
    position = np.arange(0, max_len, dtype=np.float32)[:, None]
    div_term = np.exp(np.arange(0, d_model, 2, dtype=np.float32)
                      * -(math.log(10000.0) / d_model))
    pe[:, 0::2] = np.sin(position * div_term)
    pe[:, 1::2] = np.cos(position * div_term)
    return pe[None, :L, :]


if __name__ == "__main__":
    key = jax.random.PRNGKey(0)

    # forward() only depends on x.shape[1]; values of x are irrelevant.
    cases = [
        # (x_shape, d_model, tile_rows) -- tile_rows only overridden to exercise
        # the multi-step, partial-last-block grid on a small problem.
        ((2, 8, 4), 32, None),      # lane-dense flat path, single block
        ((2, 600, 4), 32, 64),      # flat path, 3 grid steps, partial last block
        ((2, 10, 4), 32, None),     # fallback (1, L, D) path (L not mult of 128//D)
        ((1, 24, 4), 128, None),    # already lane-dense path with D >= 128
    ]
    for shape, d_model, tile_rows in cases:
        x = jax.random.normal(key, shape, jnp.float32)
        out = jax.block_until_ready(
            positional_embedding(x, d_model, tile_rows=tile_rows))
        L = shape[1]
        assert out.shape == (1, L, d_model), out.shape
        np.testing.assert_allclose(np.asarray(out), reference_pe(L, d_model),
                                   rtol=1e-4, atol=2e-3)

    print("KERNEL_OK")
</pallas_src>

<mosaic_0001>
module attributes {stable_mosaic.version = 11 : i64} {
  func.func @pe_tile_kernel(%arg0: i32, %arg1: memref<1x128xf32, #tpu.memory_space<vmem>>, %arg2: memref<1x128xf32, #tpu.memory_space<vmem>>, %arg3: memref<2x128xf32, #tpu.memory_space<vmem>>) attributes {dimension_semantics = [#tpu.dimension_semantics<parallel>], iteration_bounds = array<i64: 1>, scalar_prefetch = 0 : i64, scratch_operands = 0 : i64, tpu.core_type = #tpu.core_type<tc>, window_params = [{pipeline_mode = #tpu.pipeline_mode<synchronous>, transform_indices = @transform_0, window_bounds = array<i64: 1, 128>}, {pipeline_mode = #tpu.pipeline_mode<synchronous>, transform_indices = @transform_1, window_bounds = array<i64: 1, 128>}, {transform_indices = @transform_2, window_bounds = array<i64: 2, 128>}]} {
    %c2_i32 = arith.constant 2 : i32
    %0 = arith.muli %arg0, %c2_i32 : i32
    %1 = tpu.iota {dimensions = array<i32: 0>} : vector<2x1xi32>
    %2 = vector.broadcast %0 : i32 to vector<2x1xi32>
    %3 = arith.addi %2, %1 : vector<2x1xi32>
    %4 = arith.sitofp %3 : vector<2x1xi32> to vector<2x1xf32>
    %c0 = arith.constant 0 : index
    %c0_0 = arith.constant 0 : index
    %5 = vector.load %arg1[%c0, %c0_0] : memref<1x128xf32, #tpu.memory_space<vmem>>, vector<1x128xf32>
    %6 = vector.broadcast %4 : vector<2x1xf32> to vector<2x128xf32>
    %7 = vector.broadcast %5 : vector<1x128xf32> to vector<2x128xf32>
    %8 = arith.mulf %6, %7 : vector<2x128xf32>
    %c0_1 = arith.constant 0 : index
    %c0_2 = arith.constant 0 : index
    %9 = vector.load %arg2[%c0_1, %c0_2] : memref<1x128xf32, #tpu.memory_space<vmem>>, vector<1x128xf32>
    %10 = vector.broadcast %9 : vector<1x128xf32> to vector<2x128xf32>
    %11 = arith.addf %8, %10 : vector<2x128xf32>
    %12 = math.sin %11 : vector<2x128xf32>
    %c0_3 = arith.constant 0 : index
    %c0_4 = arith.constant 0 : index
    %13 = vector.load %arg3[%c0_3, %c0_4] : memref<2x128xf32, #tpu.memory_space<vmem>>, vector<2x128xf32>
    tpu.vector_store %arg3[%c0_3, %c0_4], %12 {strides = array<i32>} : memref<2x128xf32, #tpu.memory_space<vmem>>, vector<2x128xf32>,
    return
  }
  func.func @transform_0(%arg0: i32) -> (i32, i32) {
    %c0_i32 = arith.constant 0 : i32
    %c0_i32_0 = arith.constant 0 : i32
    %c0_i32_1 = arith.constant 0 : i32
    return %c0_i32, %c0_i32_0 : i32, i32
  }
  func.func @transform_1(%arg0: i32) -> (i32, i32) {
    %c0_i32 = arith.constant 0 : i32
    %c0_i32_0 = arith.constant 0 : i32
    %c0_i32_1 = arith.constant 0 : i32
    return %c0_i32, %c0_i32_0 : i32, i32
  }
  func.func @transform_2(%arg0: i32) -> (i32, i32) {
    %c0_i32 = arith.constant 0 : i32
    %c0_i32_0 = arith.constant 0 : i32
    return %arg0, %c0_i32 : i32, i32
  }
}

</mosaic_0001>

<llo_original>
// kernel: tpu_custom_call.1
$region0: #{tpu_custom_call.1}
  #allocation0 [shape = 'u32[]', space=smem, size = 0x4, offset = 0x4, fixed_abs, tag = 'smem constant byte address 0x4 - core index']
  #allocation1 [shape = 'u32[144,128]{1,0:T(1,128)}', space=vmem, size = 0x12000, scoped, tag = 'internal scratch']
  %s0 = inlined_call_operand.hbm [shape: f32[1,128], index: 0, kind: input, shape index: {}]
  %s1 = inlined_call_operand.vmem [shape: f32[1,128], index: 1, kind: input, shape index: {}]
  %s2 = inlined_call_operand.hbm [shape: f32[2,128], index: 2, kind: output, shape index: {}]
  %s3 = sld [smem:[#allocation0]]
  $region22: #{tpu_custom_call.1} parent=0
    _
  %s5 = ssub.s32 1, %s3
  %s6 = scalar_select 0, %s5, %s3
  $region1: #{tpu_custom_call.1} parent=0
    #allocation2 [shape = 'u8[512]{0}', space=vmem, size = 0x400, scoped, tag = 'input window, operand 0, single buffered']
    #allocation3 [shape = 's32[1]{0}', space=sflag, size = 0x4, scoped, tag = 'scoped memory for tpu_custom_call.1']
    #allocation4 [shape = 's32[1]{0}', space=sflag, size = 0x4, scoped, tag = 'scoped memory for tpu_custom_call.1']
    #allocation5 [shape = 'u8[1024]{0}', space=vmem, size = 0x400, scoped, tag = 'output window, operand 0, single buffered']
    %7 = vsyncpa [#allocation3], 0
    %8 = vsyncpa [#allocation4], 0
    // Predicated region
    $region2: #{tpu_custom_call.1} parent=1 // pred_check
      _
    $region3: #{tpu_custom_call.1} parent=1 // pred_check_branch
      %10 = sbr.rel (0) target = $region5
    $region4: #{tpu_custom_call.1} parent=1 // pred_region
      %s12 = ssub.s32 16, 16
      %13 = vsyncadd [#allocation3], %s12
      %s15 = sshll.u32 [#allocation2], 4
      %s16 = int_to_ptr.vmem [resolvable:$true] %s15
      %18 = dma.hbm_to_vmem [thread:$0]  %s0, 16, %s16, [#allocation3]
    $region5: #{tpu_custom_call.1} parent=1 // pred_fallthru
      _
    // Predicated region
    $region6: #{tpu_custom_call.1} parent=1 // pred_check
      _
    $region7: #{tpu_custom_call.1} parent=1 // pred_check_branch
      %20 = sbr.rel (0) target = $region9
    $region8: #{tpu_custom_call.1} parent=1 // pred_region
      _
    $region9: #{tpu_custom_call.1} parent=1 // pred_fallthru
      _
    // Predicated region
    $region10: #{tpu_custom_call.1} parent=1 // pred_check
      _
    $region11: #{tpu_custom_call.1} parent=1 // pred_check_branch
      %22 = sbr.rel (0) target = $region13
    $region12: #{tpu_custom_call.1} parent=1 // pred_region
      %23 = dma.done [#allocation3], 16
    $region13: #{tpu_custom_call.1} parent=1 // pred_fallthru
      _
    %s24 = smul.u32 0, 2
    %v25 = vlaneseq
    %v26 = vshrl.u32 %v25, 7
    %v27 = vstv %s24
    %v28 = vadd.s32 %v27, %v26
    %v29 = vcvt.s32.f32 %v28
    %v30 = vld [vmem:[#allocation2] sm:$0x1]
    %v32 = vlaneseq
    %v33 = vshrl.u32 %v32, 7
    %v34 = vsub.s32 0, %v33
    %v35 = vrot.slane %v30, %v34
    %v37 = vmul.f32 %v29, %v35
    %v38 = vld [vmem:[%s1] sm:$0x1]
    %v40 = vlaneseq
    %v41 = vshrl.u32 %v40, 7
    %v42 = vsub.s32 0, %v41
    %v43 = vrot.slane %v38, %v42
    %v45 = vadd.f32 %v37, %v43
    %v46 = vand.u32 2147483647, %v45
    %vm47 = vcmp.le.f32.partialorder %v46, 0.7853982
    %vm48 = vcmp.lt.s32.totalorder %v45, 0
    %v49 = vand.u32 %v45, 2139095040
    %v50 = vshrl.u32 %v49, 23
    %v51 = vsub.s32 %v50, 127
    %v52 = vand.u32 2147483647, %v45
    %v53 = vand.u32 %v52, 8388607
    %v54 = vor.u32 %v53, 8388608
    %v55 = vsub.s32 0, %v54
    %v56 = vadd.s32 %v51, 1
    %vm57 = vcmp.gt.s32.totalorder %v56, 0
    %v58 = vsel %vm57, %v56, 0
    %v59 = vshrl.u32 %v58, 5
    %v60 = vand.u32 %v58, 31
    %v61 = vsub.s32 32, %v60
    %v62 = vshrl.u32 683565275, %v61
    %v63 = vshll.u32 683565275, %v60
    %v64 = vshrl.u32 2475754826, %v61
    %v65 = vor.u32 %v63, %v64
    %v66 = vshll.u32 2475754826, %v60
    %v67 = vshrl.u32 2131351028, %v61
    %v68 = vor.u32 %v66, %v67
    %v69 = vshll.u32 2131351028, %v60
    %v70 = vshrl.u32 2102212464, %v61
    %v71 = vor.u32 %v69, %v70
    %v72 = vshll.u32 2102212464, %v60
    %v73 = vshrl.u32 920167782, %v61
    %v74 = vor.u32 %v72, %v73
    %v75 = vshll.u32 920167782, %v60
    %v76 = vshrl.u32 1326507024, %v61
    %v77 = vor.u32 %v75, %v76
    %vm78 = vcmp.lt.s32.totalorder %v59, 1
    %vm79 = vcmp.lt.s32.totalorder %v59, 2
    %vm80 = vcmp.lt.s32.totalorder %v59, 3
    %vm81 = vcmp.lt.s32.totalorder %v59, 4
    %v82 = vsel %vm78, %v62, %v65
    %v83 = vsel %vm81, %v71, 2102212464
    %v84 = vsel %vm80, %v68, %v83
    %v85 = vsel %vm79, %v82, %v84
    %v86 = vsel %vm78, %v65, %v68
    %v87 = vsel %vm81, %v74, 920167782
    %v88 = vsel %vm80, %v71, %v87
    %v89 = vsel %vm79, %v86, %v88
    %v90 = vsel %vm78, %v68, %v71
    %v91 = vsel %vm81, %v77, 1326507024
    %v92 = vsel %vm80, %v74, %v91
    %v93 = vsel %vm79, %v90, %v92
    %v94 = vshll.u32 %v54, 8
    %v95 = vmul.u32.u64.compose %v94, %v93
    %v96 = vextract.low.u32 %v95
    %v97 = vextract.high.u32 %v95
    %v98 = vmul.u32.u64.compose %v94, %v89
    %v99 = vextract.low.u32 %v98
    %v100 = vextract.high.u32 %v98
    %v101 = vmul.u32 %v94, %v85
    %v102 = vadd.s32 %v97, %v99
    %vm103 = vc.u32 %v97, %v99
    %v104 = vadd.s32 %v100, 1
    %v105 = vsel %vm103, %v104, %v100
    %v106 = vadd.s32 %v101, %v105
    %v107 = vadd.s32 %v106, 536870912
    %v108 = vshrl.u32 %v107, 30
    %v109 = vshll.u32 %v108, 30
    %v110 = vsub.s32 %v106, %v109
    %vm111 = vcmp.lt.s32.totalorder %v110, 0
    %v112 = vsub.s32 0, %v110
    %v113 = vsel %vm111, %v112, %v110
    %v114 = vclz %v113
    %v115 = vsub.s32 %v114, 2
    %vm116 = vcmp.gt.s32.totalorder 0, %v115
    %v117 = vsel %vm116, 0, %v115
    %v118 = vsub.s32 32, %v117
    %v119 = vshll.u32 %v110, %v117
    %v120 = vshrl.u32 %v102, %v118
    %v121 = vor.u32 %v119, %v120
    %v122 = vsub.s32 4294967266, %v117
    %v123 = vadd.s32 %v122, 127
    %v124 = vshll.u32 %v123, 23
    %v125 = vor.u32 4788187, %v124
    %v126 = vand.u32 2147483647, %v125
    %v128 = vcvt.s32.f32 %v121
    %v129 = vmul.f32 %v128, %v126
    %v130 = vxor.u32 %v129, 2147483648
    %v131 = vsel %vm48, %v130, %v129
    %v132 = vsub.s32 4, %v108
    %v133 = vsel %vm48, %v132, %v108
    %v134 = vsel %vm47, %v45, %v131
    %v135 = vsel %vm47, 0, %v133
    %v136 = vcosq.f32.pop %v134
    %v137 = vsinq.f32.pop %v134
    %vm138 = vweird.f32 %v45
    %v139 = vadd.s32 %v135, 3
    %v140 = vand.u32 %v139, 3
    %vm141 = vcmp.lt.s32.totalorder %v140, 2
    %vm142 = vcmp.eq.s32.totalorder %v140, 0
    %v143 = vxor.u32 %v137, 2147483648
    %v144 = vsel %vm142, %v136, %v143
    %vm145 = vcmp.eq.s32.totalorder %v140, 2
    %v146 = vxor.u32 %v136, 2147483648
    %v147 = vsel %vm145, %v146, %v137
    %v148 = vsel %vm141, %v144, %v147
    %v149 = vsel %vm138, nan, %v148
    %150 = vst [vmem:[#allocation5] sm:$0x3] %v149
    // Predicated region
    $region14: #{tpu_custom_call.1} parent=1 // pred_check
      _
    $region15: #{tpu_custom_call.1} parent=1 // pred_check_branch
      %152 = sbr.rel (0) target = $region17
    $region16: #{tpu_custom_call.1} parent=1 // pred_region
      %s154 = ssub.s32 32, 32
      %155 = vsyncadd [#allocation4], %s154
      %s157 = sshll.u32 [#allocation5], 4
      %s158 = int_to_ptr.vmem [resolvable:$true] %s157
      %160 = dma.vmem_to_hbm [thread:$0]  %s158, 32, %s2, [#allocation4]
    $region17: #{tpu_custom_call.1} parent=1 // pred_fallthru
      _
    // Predicated region
    $region18: #{tpu_custom_call.1} parent=1 // pred_check
      _
    $region19: #{tpu_custom_call.1} parent=1 // pred_check_branch
      %162 = sbr.rel (0) target = $region21
    $region20: #{tpu_custom_call.1} parent=1 // pred_region
      %163 = dma.done [#allocation4], 32
    $region21: #{tpu_custom_call.1} parent=1 // pred_fallthru
      _
    %164 = vsyncpa [#allocation3], 1
    %165 = vsyncpa [#allocation4], 1

</llo_original>
